<compile_context>
chip_gen: v5e
topology: v5e:2x2
jax: 0.10.0
libtpu: 0.0.40
codegen_flags: <defaults>
</compile_context>

<pallas_src>
import jax
import jax.numpy as jnp
from jax.experimental import pallas as pl
from jax.experimental.pallas import tpu as pltpu


def _log_softmax_kernel(logits_ref, log_probs_ref):
    """Numerically stable log-softmax over the last (lane) axis of one tile."""
    x = logits_ref[...].astype(jnp.float32)
    m = jnp.max(x, axis=-1, keepdims=True)          # XLU reduce
    shifted = x - m                                  # VPU
    e = jnp.exp(shifted)                             # EUP (own VLIW slot)
    denom = jnp.sum(e, axis=-1, keepdims=True)       # XLU reduce
    log_probs = shifted - jnp.log(denom)             # EUP + VPU
    log_probs_ref[...] = log_probs.astype(log_probs_ref.dtype)


def _pick_batch_tile(batch, num_classes, itemsize):
    """Biggest batch tile (multiple of 8) whose pipelined buffers fit VMEM.

    Budget ~8 MiB for (1 input + 1 output) x 2 double-buffers, which is safe
    even on v7x's 32 MiB scoped-VMEM default, while being large enough
    (up to 512 rows) to sit near the HBM roofline on v5e/v6e.
    """
    budget_bytes = 8 * 1024 * 1024
    bytes_per_row = 4 * num_classes * max(itemsize, 4)  # 2 arrays x 2 buffers, f32 worst case
    tb = budget_bytes // max(bytes_per_row, 1)
    tb = max(8, min(512, tb))
    tb = (tb // 8) * 8
    if tb >= batch:
        return batch  # full-extent block is always legal
    return tb


def categorical_pallas(logits):
    """Normalized log-probs of `logits` over the last axis via a Pallas kernel.

    Accepts (..., num_classes); leading dims are flattened into a batch axis
    for the kernel and restored afterwards.
    """
    orig_shape = logits.shape
    num_classes = orig_shape[-1]
    flat = logits.reshape(-1, num_classes)
    batch = flat.shape[0]

    tb = _pick_batch_tile(batch, num_classes, flat.dtype.itemsize)
    grid = (pl.cdiv(batch, tb),)

    log_probs = pl.pallas_call(
        _log_softmax_kernel,
        out_shape=jax.ShapeDtypeStruct((batch, num_classes), flat.dtype),
        grid_spec=pl.GridSpec(
            grid=grid,
            in_specs=[pl.BlockSpec((tb, num_classes), lambda i: (i, 0))],
            out_specs=pl.BlockSpec((tb, num_classes), lambda i: (i, 0)),
        ),
        compiler_params=pltpu.CompilerParams(
            dimension_semantics=("parallel",),  # rows independent -> megacore-shardable
        ),
    )(flat)

    return log_probs.reshape(orig_shape)


class CategoricalDistribution:
    """Tiny stand-in for torch.distributions.Categorical built from kernel output."""

    def __init__(self, normalized_logits):
        self.logits = normalized_logits  # log-probabilities (normalized)

    @property
    def probs(self):
        # Lazy, like torch: derived from the normalized logits (no extra HBM
        # write inside the kernel).
        return jnp.exp(self.logits)

    def log_prob(self, value):
        return jnp.take_along_axis(self.logits, value[..., None], axis=-1)[..., 0]

    def entropy(self):
        return -jnp.sum(self.probs * self.logits, axis=-1)


class Categorical:
    """JAX/Pallas port of the PyTorch Categorical layer (no parameters)."""

    def __call__(self, logits):
        log_probs = categorical_pallas(logits)
        return CategoricalDistribution(log_probs)


if __name__ == "__main__":
    key = jax.random.PRNGKey(0)
    B, C = 8, 32  # batch of 8, 32 categories (class axis last)
    logits = jax.random.normal(key, (B, C), dtype=jnp.float32)

    layer = Categorical()
    dist = layer(logits)
    jax.block_until_ready(dist.logits)
    probs = dist.probs
    jax.block_until_ready(probs)

    # lightweight sanity checks against plain-JAX reference
    ref_log_probs = jax.nn.log_softmax(logits, axis=-1)
    ref_probs = jax.nn.softmax(logits, axis=-1)
    assert jnp.allclose(dist.logits, ref_log_probs, atol=1e-5), "log-probs mismatch"
    assert jnp.allclose(probs, ref_probs, atol=1e-5), "probs mismatch"
    assert jnp.allclose(jnp.sum(probs, axis=-1), 1.0, atol=1e-5), "probs not normalized"

    print("KERNEL_OK")
</pallas_src>

<mosaic_0001>
module attributes {stable_mosaic.version = 11 : i64} {
  func.func @_log_softmax_kernel(%arg0: i32, %arg1: memref<8x32xf32, #tpu.memory_space<vmem>>, %arg2: memref<8x32xf32, #tpu.memory_space<vmem>>) attributes {dimension_semantics = [#tpu.dimension_semantics<parallel>], iteration_bounds = array<i64: 1>, scalar_prefetch = 0 : i64, scratch_operands = 0 : i64, tpu.core_type = #tpu.core_type<tc>, window_params = [{transform_indices = @transform_0, window_bounds = array<i64: 8, 32>}, {transform_indices = @transform_1, window_bounds = array<i64: 8, 32>}]} {
    %c0 = arith.constant 0 : index
    %c0_0 = arith.constant 0 : index
    %0 = vector.load %arg1[%c0, %c0_0] : memref<8x32xf32, #tpu.memory_space<vmem>>, vector<8x32xf32>
    %cst = arith.constant dense<0xFF800000> : vector<8xf32>
    %1 = vector.multi_reduction <maximumf>, %0, %cst [1] : vector<8x32xf32> to vector<8xf32>
    %2 = vector.shape_cast %1 : vector<8xf32> to vector<8x1xf32>
    %3 = vector.broadcast %2 : vector<8x1xf32> to vector<8x32xf32>
    %4 = arith.subf %0, %3 : vector<8x32xf32>
    %5 = math.exp %4 : vector<8x32xf32>
    %cst_1 = arith.constant dense<0.000000e+00> : vector<8xf32>
    %6 = vector.multi_reduction <add>, %5, %cst_1 [1] : vector<8x32xf32> to vector<8xf32>
    %7 = vector.shape_cast %6 : vector<8xf32> to vector<8x1xf32>
    %8 = math.log %7 : vector<8x1xf32>
    %9 = vector.broadcast %8 : vector<8x1xf32> to vector<8x32xf32>
    %10 = arith.subf %4, %9 : vector<8x32xf32>
    %c0_2 = arith.constant 0 : index
    %c0_3 = arith.constant 0 : index
    %11 = vector.load %arg2[%c0_2, %c0_3] : memref<8x32xf32, #tpu.memory_space<vmem>>, vector<8x32xf32>
    tpu.vector_store %arg2[%c0_2, %c0_3], %10 {strides = array<i32>} : memref<8x32xf32, #tpu.memory_space<vmem>>, vector<8x32xf32>,
    return
  }
  func.func @transform_0(%arg0: i32) -> (i32, i32) {
    %c0_i32 = arith.constant 0 : i32
    %c0_i32_0 = arith.constant 0 : i32
    return %arg0, %c0_i32 : i32, i32
  }
  func.func @transform_1(%arg0: i32) -> (i32, i32) {
    %c0_i32 = arith.constant 0 : i32
    %c0_i32_0 = arith.constant 0 : i32
    return %arg0, %c0_i32 : i32, i32
  }
}

</mosaic_0001>

<llo_original>
// kernel: tpu_custom_call.1
$region0: #{tpu_custom_call.1}
  #allocation0 [shape = 'u32[]', space=smem, size = 0x4, offset = 0x4, fixed_abs, tag = 'smem constant byte address 0x4 - core index']
  #allocation1 [shape = 'u32[72,128]{1,0:T(1,128)}', space=vmem, size = 0x9000, scoped, tag = 'internal scratch']
  %s0 = inlined_call_operand.hbm [shape: f32[8,32], index: 0, kind: input, shape index: {}]
  %s1 = inlined_call_operand.hbm [shape: f32[8,32], index: 1, kind: output, shape index: {}]
  %s2 = sld [smem:[#allocation0]]
  $region18: #{tpu_custom_call.1} parent=0
    _
  %s4 = ssub.s32 1, %s2
  %s5 = scalar_select 0, %s4, %s2
  $region1: #{tpu_custom_call.1} parent=0
    #allocation2 [shape = 'u8[4096]{0}', space=vmem, size = 0x1000, scoped, tag = 'input window, operand 0, single buffered']
    #allocation3 [shape = 's32[1]{0}', space=sflag, size = 0x4, scoped, tag = 'scoped memory for tpu_custom_call.1']
    #allocation4 [shape = 's32[1]{0}', space=sflag, size = 0x4, scoped, tag = 'scoped memory for tpu_custom_call.1']
    #allocation5 [shape = 'u8[4096]{0}', space=vmem, size = 0x1000, scoped, tag = 'output window, operand 0, single buffered']
    %6 = vsyncpa [#allocation3], 0
    %7 = vsyncpa [#allocation4], 0
    // Predicated region
    $region2: #{tpu_custom_call.1} parent=1 // pred_check
      _
    $region3: #{tpu_custom_call.1} parent=1 // pred_check_branch
      %9 = sbr.rel (0) target = $region5
    $region4: #{tpu_custom_call.1} parent=1 // pred_region
      %11 = vsyncadd [#allocation3], 0
      %s13 = sshll.u32 %s0, 4
      %s14 = int_to_ptr.hbm [resolvable:$true] %s13
      %s15 = sshll.u32 [#allocation2], 4
      %s16 = int_to_ptr.vmem [resolvable:$true] %s15
      %18 = dma.hbm_to_vmem [thread:$0]  %s14, 128, %s16, [#allocation3]
    $region5: #{tpu_custom_call.1} parent=1 // pred_fallthru
      _
    // Predicated region
    $region6: #{tpu_custom_call.1} parent=1 // pred_check
      _
    $region7: #{tpu_custom_call.1} parent=1 // pred_check_branch
      %20 = sbr.rel (0) target = $region9
    $region8: #{tpu_custom_call.1} parent=1 // pred_region
      %22 = dma.done [#allocation3], 128
    $region9: #{tpu_custom_call.1} parent=1 // pred_fallthru
      _
    %v23 = vld [vmem:[#allocation2] sm:$0xff]
    %vm24 = vcmask 261120
    %v25 = vsel %vm24, %v23, -inf
    %26 = vmax.xlane.f32.xlu0 %v25
    %v27 = vpop.xlane.xlu0 %26
    %v28 = vsub.f32 %v23, %v27
    %v29 = vmul.f32 %v28, 1.442695
    %v30 = vpow.pop %v29
    %v31 = vsel %vm24, %v30, 0.0
    %32 = vadd.xlane.f32.xlu0 %v31
    %v33 = vpop.xlane.xlu0 %32
    %v34 = vlog2.pop %v33
    %v35 = vmul.f32 %v34, 0.6931472
    %v36 = vsub.f32 %v28, %v35
    %37 = vst.msk [vmem:[#allocation5] sm:$0xff] %vm24, %v36
    // Predicated region
    $region10: #{tpu_custom_call.1} parent=1 // pred_check
      _
    $region11: #{tpu_custom_call.1} parent=1 // pred_check_branch
      %39 = sbr.rel (0) target = $region13
    $region12: #{tpu_custom_call.1} parent=1 // pred_region
      %41 = vsyncadd [#allocation4], 0
      %s43 = sshll.u32 [#allocation5], 4
      %s44 = int_to_ptr.vmem [resolvable:$true] %s43
      %s45 = sshll.u32 %s1, 4
      %s46 = int_to_ptr.hbm [resolvable:$true] %s45
      %48 = dma.vmem_to_hbm [thread:$0]  %s44, 128, %s46, [#allocation4]
    $region13: #{tpu_custom_call.1} parent=1 // pred_fallthru
      _
    // Predicated region
    $region14: #{tpu_custom_call.1} parent=1 // pred_check
      _
    $region15: #{tpu_custom_call.1} parent=1 // pred_check_branch
      %50 = sbr.rel (0) target = $region17
    $region16: #{tpu_custom_call.1} parent=1 // pred_region
      %52 = dma.done [#allocation4], 128
    $region17: #{tpu_custom_call.1} parent=1 // pred_fallthru
      _
    %53 = vsyncpa [#allocation3], 1
    %54 = vsyncpa [#allocation4], 1

</llo_original>
